<compile_context>
chip_gen: v7x
topology: tpu7x:2x2x1
jax: 0.10.0
libtpu: 0.0.40
codegen_flags: <defaults>
</compile_context>

<pallas_src>
import functools

import jax
import jax.numpy as jnp
from jax.experimental import pallas as pl
from jax.experimental.pallas import tpu as pltpu


def _qnetwork_kernel(x_ref, w1_ref, w2_ref, w3_ref, b_ref, o_ref, *, n1, n2, n3):
    """Fused 3-layer MLP on one (TB, n_obs) batch tile.

    b_ref is the packed bias buffer: row 0 = layer1 bias (first n1 lanes),
    row 1 = layer2 bias (first n2 lanes), row 2 = layer3 bias (first n3 lanes).
    """
    x = x_ref[...]
    b1 = b_ref[0:1, 0:n1]
    b2 = b_ref[1:2, 0:n2]
    b3 = b_ref[2:3, 0:n3]

    # Layer 1: Linear + ReLU
    h1 = jnp.dot(x, w1_ref[...], preferred_element_type=jnp.float32) + b1
    h1 = jnp.maximum(h1, 0.0)
    # Layer 2: Linear + ReLU
    h2 = jnp.dot(h1, w2_ref[...], preferred_element_type=jnp.float32) + b2
    h2 = jnp.maximum(h2, 0.0)
    # Layer 3: Linear (no activation)
    o_ref[...] = (
        jnp.dot(h2, w3_ref[...], preferred_element_type=jnp.float32) + b3
    ).astype(o_ref.dtype)


@jax.jit
def qnetwork_forward(x, w1, b1, w2, b2, w3, b3):
    B, n_obs = x.shape
    n1 = w1.shape[1]
    n2 = w2.shape[1]
    n3 = w3.shape[1]

    # Batch tile: multiple of 8 sublanes, large enough to amortize per-step
    # overhead, capped to keep the 128-lane-padded x/out blocks small in VMEM.
    TB = min(512, max(8, 8 * pl.cdiv(B, 8)))
    Bp = TB * pl.cdiv(B, TB)
    if Bp != B:
        x = jnp.pad(x, ((0, Bp - B), (0, 0)))

    # Pack the three tiny biases into one VMEM buffer (1 DMA instead of 3).
    max_w = max(n1, n2, n3)
    b_pack = jnp.zeros((3, max_w), jnp.float32)
    b_pack = b_pack.at[0, :n1].set(b1.reshape(-1).astype(jnp.float32))
    b_pack = b_pack.at[1, :n2].set(b2.reshape(-1).astype(jnp.float32))
    b_pack = b_pack.at[2, :n3].set(b3.reshape(-1).astype(jnp.float32))

    kernel = functools.partial(_qnetwork_kernel, n1=n1, n2=n2, n3=n3)
    out = pl.pallas_call(
        kernel,
        out_shape=jax.ShapeDtypeStruct((Bp, n3), jnp.float32),
        grid_spec=pltpu.PrefetchScalarGridSpec(
            num_scalar_prefetch=0,
            grid=(Bp // TB,),
            in_specs=[
                # Batch tile of activations: streamed (double-buffered).
                pl.BlockSpec((TB, n_obs), lambda i: (i, 0)),
                # Weights & packed biases: constant block index -> VMEM-resident.
                pl.BlockSpec((n_obs, n1), lambda i: (0, 0)),
                pl.BlockSpec((n1, n2), lambda i: (0, 0)),
                pl.BlockSpec((n2, n3), lambda i: (0, 0)),
                pl.BlockSpec((3, max_w), lambda i: (0, 0)),
            ],
            out_specs=pl.BlockSpec((TB, n3), lambda i: (i, 0)),
        ),
        compiler_params=pltpu.CompilerParams(
            dimension_semantics=("parallel",)),
    )(x, w1, w2, w3, b_pack)
    return out[:B]


def init_linear_params(key, fan_in, fan_out):
    """Deterministic init mimicking torch.nn.Linear default U[-1/sqrt(fan_in), +].

    Weight is stored as (in, out): the transpose of PyTorch's (out, in) layout.
    """
    k_w, k_b = jax.random.split(key)
    bound = 1.0 / jnp.sqrt(jnp.float32(fan_in))
    w = jax.random.uniform(k_w, (fan_in, fan_out), jnp.float32, -bound, bound)
    b = jax.random.uniform(k_b, (1, fan_out), jnp.float32, -bound, bound)
    return w, b


def _reference(x, w1, b1, w2, b2, w3, b3):
    h = jnp.maximum(x @ w1 + b1, 0.0)
    h = jnp.maximum(h @ w2 + b2, 0.0)
    return h @ w3 + b3


if __name__ == "__main__":
    # CartPole-like sizes: 4 observations, 2 actions, small hidden layers.
    n_observations = 4
    n_actions = 2
    nn_l1 = 64
    nn_l2 = 32
    batch = 8

    key = jax.random.PRNGKey(0)
    kx, k1, k2, k3, kb = jax.random.split(key, 5)

    x = jax.random.normal(kx, (batch, n_observations), dtype=jnp.float32)
    w1, b1 = init_linear_params(k1, n_observations, nn_l1)
    w2, b2 = init_linear_params(k2, nn_l1, nn_l2)
    w3, b3 = init_linear_params(k3, nn_l2, n_actions)

    out = qnetwork_forward(x, w1, b1, w2, b2, w3, b3)
    out = jax.block_until_ready(out)
    ref = _reference(x, w1, b1, w2, b2, w3, b3)
    assert out.shape == (batch, n_actions)
    assert jnp.allclose(out, ref, atol=1e-5, rtol=1e-5)

    # Exercise the multi-block batch grid + padding path (replay-buffer-sized
    # batch, not a multiple of the tile size).
    xb = jax.random.normal(kb, (1100, n_observations), dtype=jnp.float32)
    out_b = jax.block_until_ready(qnetwork_forward(xb, w1, b1, w2, b2, w3, b3))
    ref_b = _reference(xb, w1, b1, w2, b2, w3, b3)
    assert out_b.shape == (1100, n_actions)
    assert jnp.allclose(out_b, ref_b, atol=1e-5, rtol=1e-5)

    print("KERNEL_OK")
</pallas_src>

<mosaic_0001>
module attributes {stable_mosaic.version = 11 : i64} {
  func.func @_qnetwork_kernel(%arg0: i32, %arg1: memref<8x4xf32, #tpu.memory_space<vmem>>, %arg2: memref<4x64xf32, #tpu.memory_space<vmem>>, %arg3: memref<64x32xf32, #tpu.memory_space<vmem>>, %arg4: memref<32x2xf32, #tpu.memory_space<vmem>>, %arg5: memref<3x64xf32, #tpu.memory_space<vmem>>, %arg6: memref<8x2xf32, #tpu.memory_space<vmem>>) attributes {dimension_semantics = [#tpu.dimension_semantics<parallel>], iteration_bounds = array<i64: 1>, scalar_prefetch = 0 : i64, scratch_operands = 0 : i64, tpu.core_type = #tpu.core_type<tc>, window_params = [{transform_indices = @transform_0, window_bounds = array<i64: 8, 4>}, {pipeline_mode = #tpu.pipeline_mode<synchronous>, transform_indices = @transform_1, window_bounds = array<i64: 4, 64>}, {pipeline_mode = #tpu.pipeline_mode<synchronous>, transform_indices = @transform_2, window_bounds = array<i64: 64, 32>}, {pipeline_mode = #tpu.pipeline_mode<synchronous>, transform_indices = @transform_3, window_bounds = array<i64: 32, 2>}, {pipeline_mode = #tpu.pipeline_mode<synchronous>, transform_indices = @transform_4, window_bounds = array<i64: 3, 64>}, {transform_indices = @transform_5, window_bounds = array<i64: 8, 2>}]} {
    %c0 = arith.constant 0 : index
    %c0_0 = arith.constant 0 : index
    %0 = vector.load %arg1[%c0, %c0_0] : memref<8x4xf32, #tpu.memory_space<vmem>>, vector<8x4xf32>
    %c0_1 = arith.constant 0 : index
    %c0_2 = arith.constant 0 : index
    %1 = vector.load %arg5[%c0_1, %c0_2] : memref<3x64xf32, #tpu.memory_space<vmem>>, vector<1x64xf32>
    %c1 = arith.constant 1 : index
    %c0_3 = arith.constant 0 : index
    %2 = vector.load %arg5[%c1, %c0_3] : memref<3x64xf32, #tpu.memory_space<vmem>>, vector<1x32xf32>
    %c2 = arith.constant 2 : index
    %c0_4 = arith.constant 0 : index
    %3 = vector.load %arg5[%c2, %c0_4] : memref<3x64xf32, #tpu.memory_space<vmem>>, vector<1x2xf32>
    %c0_5 = arith.constant 0 : index
    %c0_6 = arith.constant 0 : index
    %4 = vector.load %arg2[%c0_5, %c0_6] : memref<4x64xf32, #tpu.memory_space<vmem>>, vector<4x64xf32>
    %cst = arith.constant dense<0.000000e+00> : vector<8x64xf32>
    %5 = tpu.matmul %0, %4, %cst {dimension_numbers = #tpu.dot_dimension_numbers<[1], [0], [0], [1], [0, 0, 1, 1], [], []>} : vector<8x4xf32>, vector<4x64xf32>, vector<8x64xf32> -> vector<8x64xf32>
    %6 = vector.broadcast %1 : vector<1x64xf32> to vector<8x64xf32>
    %7 = arith.addf %5, %6 : vector<8x64xf32>
    %cst_7 = arith.constant 0.000000e+00 : f32
    %8 = vector.broadcast %cst_7 : f32 to vector<8x64xf32>
    %9 = arith.maximumf %7, %8 : vector<8x64xf32>
    %c0_8 = arith.constant 0 : index
    %c0_9 = arith.constant 0 : index
    %10 = vector.load %arg3[%c0_8, %c0_9] : memref<64x32xf32, #tpu.memory_space<vmem>>, vector<64x32xf32>
    %cst_10 = arith.constant dense<0.000000e+00> : vector<8x32xf32>
    %11 = tpu.matmul %9, %10, %cst_10 {dimension_numbers = #tpu.dot_dimension_numbers<[1], [0], [0], [1], [0, 0, 1, 1], [], []>} : vector<8x64xf32>, vector<64x32xf32>, vector<8x32xf32> -> vector<8x32xf32>
    %12 = vector.broadcast %2 : vector<1x32xf32> to vector<8x32xf32>
    %13 = arith.addf %11, %12 : vector<8x32xf32>
    %cst_11 = arith.constant 0.000000e+00 : f32
    %14 = vector.broadcast %cst_11 : f32 to vector<8x32xf32>
    %15 = arith.maximumf %13, %14 : vector<8x32xf32>
    %c0_12 = arith.constant 0 : index
    %c0_13 = arith.constant 0 : index
    %16 = vector.load %arg4[%c0_12, %c0_13] : memref<32x2xf32, #tpu.memory_space<vmem>>, vector<32x2xf32>
    %cst_14 = arith.constant dense<0.000000e+00> : vector<8x2xf32>
    %17 = tpu.matmul %15, %16, %cst_14 {dimension_numbers = #tpu.dot_dimension_numbers<[1], [0], [0], [1], [0, 0, 1, 1], [], []>} : vector<8x32xf32>, vector<32x2xf32>, vector<8x2xf32> -> vector<8x2xf32>
    %18 = vector.broadcast %3 : vector<1x2xf32> to vector<8x2xf32>
    %19 = arith.addf %17, %18 : vector<8x2xf32>
    %c0_15 = arith.constant 0 : index
    %c0_16 = arith.constant 0 : index
    %20 = vector.load %arg6[%c0_15, %c0_16] : memref<8x2xf32, #tpu.memory_space<vmem>>, vector<8x2xf32>
    tpu.vector_store %arg6[%c0_15, %c0_16], %19 {strides = array<i32>} : memref<8x2xf32, #tpu.memory_space<vmem>>, vector<8x2xf32>,
    return
  }
  func.func @transform_0(%arg0: i32) -> (i32, i32) {
    %c0_i32 = arith.constant 0 : i32
    %c0_i32_0 = arith.constant 0 : i32
    return %arg0, %c0_i32 : i32, i32
  }
  func.func @transform_1(%arg0: i32) -> (i32, i32) {
    %c0_i32 = arith.constant 0 : i32
    %c0_i32_0 = arith.constant 0 : i32
    %c0_i32_1 = arith.constant 0 : i32
    return %c0_i32, %c0_i32_0 : i32, i32
  }
  func.func @transform_2(%arg0: i32) -> (i32, i32) {
    %c0_i32 = arith.constant 0 : i32
    %c0_i32_0 = arith.constant 0 : i32
    %c0_i32_1 = arith.constant 0 : i32
    return %c0_i32, %c0_i32_0 : i32, i32
  }
  func.func @transform_3(%arg0: i32) -> (i32, i32) {
    %c0_i32 = arith.constant 0 : i32
    %c0_i32_0 = arith.constant 0 : i32
    %c0_i32_1 = arith.constant 0 : i32
    return %c0_i32, %c0_i32_0 : i32, i32
  }
  func.func @transform_4(%arg0: i32) -> (i32, i32) {
    %c0_i32 = arith.constant 0 : i32
    %c0_i32_0 = arith.constant 0 : i32
    %c0_i32_1 = arith.constant 0 : i32
    return %c0_i32, %c0_i32_0 : i32, i32
  }
  func.func @transform_5(%arg0: i32) -> (i32, i32) {
    %c0_i32 = arith.constant 0 : i32
    %c0_i32_0 = arith.constant 0 : i32
    return %arg0, %c0_i32 : i32, i32
  }
}

</mosaic_0001>

<llo_original>
// kernel: qnetwork_forward.1
$region0: #{qnetwork_forward.1}
  #allocation0 [shape = 'u32[]', space=smem, size = 0x4, offset = 0x4, fixed_abs, tag = 'smem constant byte address 0x4 - core index']
  #allocation1 [shape = 'u32[144,128]{1,0:T(1,128)}', space=vmem, size = 0x12000, scoped, tag = 'internal scratch']
  %s0 = inlined_call_operand.vmem [shape: f32[8,4], index: 0, kind: input, shape index: {}]
  %s1 = inlined_call_operand.vmem [shape: f32[4,64], index: 1, kind: input, shape index: {}]
  %s2 = inlined_call_operand.vmem [shape: f32[64,32], index: 2, kind: input, shape index: {}]
  %s3 = inlined_call_operand.vmem [shape: f32[32,2], index: 3, kind: input, shape index: {}]
  %s4 = inlined_call_operand.vmem [shape: f32[3,64], index: 4, kind: input, shape index: {}]
  %s5 = inlined_call_operand.vmem [shape: f32[8,2], index: 5, kind: output, shape index: {}]
  %s6 = sld [smem:[#allocation0]]
  $region30: #{qnetwork_forward.1} parent=0
    _
  %s8 = ssub.s32 1, %s6
  %s9 = scalar_select 0, %s8, %s6
  // Predicated region
  $region2: #{qnetwork_forward.1} parent=0 // pred_check
    _
  $region3: #{qnetwork_forward.1} parent=0 // pred_check_branch
    %11 = sbr.rel (0) target = $region5
  $region4: #{qnetwork_forward.1} parent=0 // pred_region
    _
  $region5: #{qnetwork_forward.1} parent=0 // pred_fallthru
    _
  // Predicated region
  $region6: #{qnetwork_forward.1} parent=0 // pred_check
    _
  $region7: #{qnetwork_forward.1} parent=0 // pred_check_branch
    %13 = sbr.rel (0) target = $region9
  $region8: #{qnetwork_forward.1} parent=0 // pred_region
    _
  $region9: #{qnetwork_forward.1} parent=0 // pred_fallthru
    _
  // Predicated region
  $region10: #{qnetwork_forward.1} parent=0 // pred_check
    _
  $region11: #{qnetwork_forward.1} parent=0 // pred_check_branch
    %15 = sbr.rel (0) target = $region13
  $region12: #{qnetwork_forward.1} parent=0 // pred_region
    _
  $region13: #{qnetwork_forward.1} parent=0 // pred_fallthru
    _
  // Predicated region
  $region14: #{qnetwork_forward.1} parent=0 // pred_check
    _
  $region15: #{qnetwork_forward.1} parent=0 // pred_check_branch
    %17 = sbr.rel (0) target = $region17
  $region16: #{qnetwork_forward.1} parent=0 // pred_region
    _
  $region17: #{qnetwork_forward.1} parent=0 // pred_fallthru
    _
  // Predicated region
  $region18: #{qnetwork_forward.1} parent=0 // pred_check
    _
  $region19: #{qnetwork_forward.1} parent=0 // pred_check_branch
    %19 = sbr.rel (0) target = $region21
  $region20: #{qnetwork_forward.1} parent=0 // pred_region
    _
  $region21: #{qnetwork_forward.1} parent=0 // pred_fallthru
    _
  %v20 = vld [vmem:[%s0] sm:$0xff]
  %v21 = vld [vmem:[%s4] sm:$0x1]
  %v22 = vld [vmem:[%s4 + $0x1] sm:$0x1]
  %v23 = vld [vmem:[%s4 + $0x2] sm:$0x1]
  %v24 = vld [vmem:[%s1] sm:$0xf]
  %v25 = vlaneseq
  %v26 = vshrl.u32 %v25, 7
  %v27 = vsub.s32 0, %v26
  %v28 = vrot.slane %v21, %v27
  %vm29 = vcmask 31744
  %v31 = vsel %vm29, %v20, 0
  %vm33 = vcmask 1043456
  %v35 = vsel %vm33, %v24, 0
  %37 = vmatprep.subr.mxu0 0.0
  %38 = vmatpush1.msra.mxu0 %v35
  %39 = vmatprep.subr.mxu0 0.0
  %40 = vmatpush1.msra.mxu0 0.0
  %41 = vmatprep.subr.mxu0 0.0
  %42 = vmatpush1.msra.mxu0 0.0
  %43 = vmatprep.subr.mxu0 0.0
  %44 = vmatpush1.msra.mxu0 0.0
  %45 = vmatprep.subr.mxu0 0.0
  %46 = vmatpush1.msra.mxu0 0.0
  %47 = vmatprep.subr.mxu0 0.0
  %48 = vmatpush1.msra.mxu0 0.0
  %49 = vmatprep.subr.mxu0 0.0
  %50 = vmatpush1.msra.mxu0 0.0
  %51 = vmatprep.subr.mxu0 0.0
  %52 = vmatpush1.msra.mxu0 0.0
  %53 = vmatprep.subr.mxu0 0.0
  %54 = vmatpush1.msra.mxu0 0.0
  %55 = vmatprep.subr.mxu0 0.0
  %56 = vmatpush1.msra.mxu0 0.0
  %57 = vmatprep.subr.mxu0 0.0
  %58 = vmatpush1.msra.mxu0 0.0
  %59 = vmatprep.subr.mxu0 0.0
  %60 = vmatpush1.msra.mxu0 0.0
  %61 = vmatprep.subr.mxu0 0.0
  %62 = vmatpush1.msra.mxu0 0.0
  %63 = vmatprep.subr.mxu0 0.0
  %64 = vmatpush1.msra.mxu0 0.0
  %65 = vmatprep.subr.mxu0 0.0
  %66 = vmatpush1.msra.mxu0 0.0
  %67 = vmatprep.subr.mxu0 0.0
  %68 = vmatpush1.msra.mxu0 0.0
  %69 = vmatprep.subr.mxu0 0.0
  %70 = vmatpush1.msra.mxu0 0.0
  %71 = vmatprep.subr.mxu0 0.0
  %72 = vmatpush1.msra.mxu0 0.0
  %73 = vmatprep.subr.mxu0 0.0
  %74 = vmatpush1.msra.mxu0 0.0
  %75 = vmatprep.subr.mxu0 0.0
  %76 = vmatpush1.msra.mxu0 0.0
  %77 = vmatprep.subr.mxu0 0.0
  %78 = vmatpush1.msra.mxu0 0.0
  %79 = vmatprep.subr.mxu0 0.0
  %80 = vmatpush1.msra.mxu0 0.0
  %81 = vmatprep.subr.mxu0 0.0
  %82 = vmatpush1.msra.mxu0 0.0
  %83 = vmatprep.subr.mxu0 0.0
  %84 = vmatpush1.msra.mxu0 0.0
  %85 = vmatprep.subr.mxu0 0.0
  %86 = vmatpush1.msra.mxu0 0.0
  %87 = vmatprep.subr.mxu0 0.0
  %88 = vmatpush1.msra.mxu0 0.0
  %89 = vmatprep.subr.mxu0 0.0
  %90 = vmatpush1.msra.mxu0 0.0
  %91 = vmatprep.subr.mxu0 0.0
  %92 = vmatpush1.msra.mxu0 0.0
  %93 = vmatprep.subr.mxu0 0.0
  %94 = vmatpush1.msra.mxu0 0.0
  %95 = vmatprep.subr.mxu0 0.0
  %96 = vmatpush1.msra.mxu0 0.0
  %97 = vmatprep.subr.mxu0 0.0
  %98 = vmatpush1.msra.mxu0 0.0
  %99 = vmatprep.subr.mxu0 0.0
  %100 = vmatpush1.msra.mxu0 0.0
  %101 = vmatprep.mubr.f32.mxu0 0.0
  %102 = vmatmul.mubr.f32.gmra.mrb[0].mxu0 %v31
  %v103 = vpop.f32.mrb[0].mxu0
  %v104 = vadd.f32 %v28, %v103
  %v105 = vpop.f32.mrb[0].mxu0
  %106 = vdwg.mxu0
  %v107 = vmax.f32 %v104, 0.0
  %v108 = vld [vmem:[%s2] sm:$0xff]
  %v109 = vld [vmem:[%s2 + $0x8] sm:$0xff]
  %v110 = vld [vmem:[%s2 + $0x10] sm:$0xff]
  %v111 = vld [vmem:[%s2 + $0x18] sm:$0xff]
  %v112 = vld [vmem:[%s2 + $0x20] sm:$0xff]
  %v113 = vld [vmem:[%s2 + $0x28] sm:$0xff]
  %v114 = vld [vmem:[%s2 + $0x30] sm:$0xff]
  %v115 = vld [vmem:[%s2 + $0x38] sm:$0xff]
  %v116 = vlaneseq
  %v117 = vshrl.u32 %v116, 7
  %v118 = vsub.s32 0, %v117
  %v119 = vrot.slane %v22, %v118
  %vm120 = vcmask 523264
  %v122 = vsel %vm120, %v107, 0
  %124 = vmatprep.subr.mxu0 0.0
  %125 = vmatpush1.msra.mxu0 %v108
  %126 = vmatprep.subr.mxu0 0.0
  %127 = vmatpush1.msra.mxu0 %v109
  %128 = vmatprep.subr.mxu0 0.0
  %129 = vmatpush1.msra.mxu0 %v110
  %130 = vmatprep.subr.mxu0 0.0
  %131 = vmatpush1.msra.mxu0 %v111
  %132 = vmatprep.subr.mxu0 0.0
  %133 = vmatpush1.msra.mxu0 %v112
  %134 = vmatprep.subr.mxu0 0.0
  %135 = vmatpush1.msra.mxu0 %v113
  %136 = vmatprep.subr.mxu0 0.0
  %137 = vmatpush1.msra.mxu0 %v114
  %138 = vmatprep.subr.mxu0 0.0
  %139 = vmatpush1.msra.mxu0 %v115
  %140 = vmatprep.subr.mxu0 0.0
  %141 = vmatpush1.msra.mxu0 0.0
  %142 = vmatprep.subr.mxu0 0.0
  %143 = vmatpush1.msra.mxu0 0.0
  %144 = vmatprep.subr.mxu0 0.0
  %145 = vmatpush1.msra.mxu0 0.0
  %146 = vmatprep.subr.mxu0 0.0
  %147 = vmatpush1.msra.mxu0 0.0
  %148 = vmatprep.subr.mxu0 0.0
  %149 = vmatpush1.msra.mxu0 0.0
  %150 = vmatprep.subr.mxu0 0.0
  %151 = vmatpush1.msra.mxu0 0.0
  %152 = vmatprep.subr.mxu0 0.0
  %153 = vmatpush1.msra.mxu0 0.0
  %154 = vmatprep.subr.mxu0 0.0
  %155 = vmatpush1.msra.mxu0 0.0
  %156 = vmatprep.subr.mxu0 0.0
  %157 = vmatpush1.msra.mxu0 0.0
  %158 = vmatprep.subr.mxu0 0.0
  %159 = vmatpush1.msra.mxu0 0.0
  %160 = vmatprep.subr.mxu0 0.0
  %161 = vmatpush1.msra.mxu0 0.0
  %162 = vmatprep.subr.mxu0 0.0
  %163 = vmatpush1.msra.mxu0 0.0
  %164 = vmatprep.subr.mxu0 0.0
  %165 = vmatpush1.msra.mxu0 0.0
  %166 = vmatprep.subr.mxu0 0.0
  %167 = vmatpush1.msra.mxu0 0.0
  %168 = vmatprep.subr.mxu0 0.0
  %169 = vmatpush1.msra.mxu0 0.0
  %170 = vmatprep.subr.mxu0 0.0
  %171 = vmatpush1.msra.mxu0 0.0
  %172 = vmatprep.subr.mxu0 0.0
  %173 = vmatpush1.msra.mxu0 0.0
  %174 = vmatprep.subr.mxu0 0.0
  %175 = vmatpush1.msra.mxu0 0.0
  %176 = vmatprep.subr.mxu0 0.0
  %177 = vmatpush1.msra.mxu0 0.0
  %178 = vmatprep.subr.mxu0 0.0
  %179 = vmatpush1.msra.mxu0 0.0
  %180 = vmatprep.subr.mxu0 0.0
  %181 = vmatpush1.msra.mxu0 0.0
  %182 = vmatprep.subr.mxu0 0.0
  %183 = vmatpush1.msra.mxu0 0.0
  %184 = vmatprep.subr.mxu0 0.0
  %185 = vmatpush1.msra.mxu0 0.0
  %186 = vmatprep.subr.mxu0 0.0
  %187 = vmatpush1.msra.mxu0 0.0
  %188 = vmatprep.mubr.f32.mxu0 0.0
  %189 = vmatmul.mubr.f32.gmra.mrb[0].mxu0 %v122
  %v190 = vpop.f32.mrb[0].mxu0
  %v191 = vadd.f32 %v119, %v190
  %v192 = vpop.f32.mrb[0].mxu0
  %193 = vdwg.mxu0
  %v194 = vmax.f32 %v191, 0.0
  %v195 = vld [vmem:[%s3] sm:$0xff]
  %v196 = vld [vmem:[%s3 + $0x8] sm:$0xff]
  %v197 = vld [vmem:[%s3 + $0x10] sm:$0xff]
  %v198 = vld [vmem:[%s3 + $0x18] sm:$0xff]
  %v199 = vlaneseq
  %v200 = vshrl.u32 %v199, 7
  %v201 = vsub.s32 0, %v200
  %v202 = vrot.slane %v23, %v201
  %vm203 = vcmask 261120
  %v205 = vsel %vm203, %v194, 0
  %207 = vmatprep.subr.mxu0 0.0
  %208 = vmatpush1.msra.mxu0 %v195
  %209 = vmatprep.subr.mxu0 0.0
  %210 = vmatpush1.msra.mxu0 %v196
  %211 = vmatprep.subr.mxu0 0.0
  %212 = vmatpush1.msra.mxu0 %v197
  %213 = vmatprep.subr.mxu0 0.0
  %214 = vmatpush1.msra.mxu0 %v198
  %215 = vmatprep.subr.mxu0 0.0
  %216 = vmatpush1.msra.mxu0 0.0
  %217 = vmatprep.subr.mxu0 0.0
  %218 = vmatpush1.msra.mxu0 0.0
  %219 = vmatprep.subr.mxu0 0.0
  %220 = vmatpush1.msra.mxu0 0.0
  %221 = vmatprep.subr.mxu0 0.0
  %222 = vmatpush1.msra.mxu0 0.0
  %223 = vmatprep.subr.mxu0 0.0
  %224 = vmatpush1.msra.mxu0 0.0
  %225 = vmatprep.subr.mxu0 0.0
  %226 = vmatpush1.msra.mxu0 0.0
  %227 = vmatprep.subr.mxu0 0.0
  %228 = vmatpush1.msra.mxu0 0.0
  %229 = vmatprep.subr.mxu0 0.0
  %230 = vmatpush1.msra.mxu0 0.0
  %231 = vmatprep.subr.mxu0 0.0
  %232 = vmatpush1.msra.mxu0 0.0
  %233 = vmatprep.subr.mxu0 0.0
  %234 = vmatpush1.msra.mxu0 0.0
  %235 = vmatprep.subr.mxu0 0.0
  %236 = vmatpush1.msra.mxu0 0.0
  %237 = vmatprep.subr.mxu0 0.0
  %238 = vmatpush1.msra.mxu0 0.0
  %239 = vmatprep.subr.mxu0 0.0
  %240 = vmatpush1.msra.mxu0 0.0
  %241 = vmatprep.subr.mxu0 0.0
  %242 = vmatpush1.msra.mxu0 0.0
  %243 = vmatprep.subr.mxu0 0.0
  %244 = vmatpush1.msra.mxu0 0.0
  %245 = vmatprep.subr.mxu0 0.0
  %246 = vmatpush1.msra.mxu0 0.0
  %247 = vmatprep.subr.mxu0 0.0
  %248 = vmatpush1.msra.mxu0 0.0
  %249 = vmatprep.subr.mxu0 0.0
  %250 = vmatpush1.msra.mxu0 0.0
  %251 = vmatprep.subr.mxu0 0.0
  %252 = vmatpush1.msra.mxu0 0.0
  %253 = vmatprep.subr.mxu0 0.0
  %254 = vmatpush1.msra.mxu0 0.0
  %255 = vmatprep.subr.mxu0 0.0
  %256 = vmatpush1.msra.mxu0 0.0
  %257 = vmatprep.subr.mxu0 0.0
  %258 = vmatpush1.msra.mxu0 0.0
  %259 = vmatprep.subr.mxu0 0.0
  %260 = vmatpush1.msra.mxu0 0.0
  %261 = vmatprep.subr.mxu0 0.0
  %262 = vmatpush1.msra.mxu0 0.0
  %263 = vmatprep.subr.mxu0 0.0
  %264 = vmatpush1.msra.mxu0 0.0
  %265 = vmatprep.subr.mxu0 0.0
  %266 = vmatpush1.msra.mxu0 0.0
  %267 = vmatprep.subr.mxu0 0.0
  %268 = vmatpush1.msra.mxu0 0.0
  %269 = vmatprep.subr.mxu0 0.0
  %270 = vmatpush1.msra.mxu0 0.0
  %271 = vmatprep.mubr.f32.mxu0 0.0
  %272 = vmatmul.mubr.f32.gmra.mrb[0].mxu0 %v205
  %v273 = vpop.f32.mrb[0].mxu0
  %v274 = vadd.f32 %v202, %v273
  %v275 = vpop.f32.mrb[0].mxu0
  %276 = vdwg.mxu0
  %vm277 = vcmask 15360
  %278 = vst.msk [vmem:[%s5] sm:$0xff] %vm277, %v274
  // Predicated region
  $region22: #{qnetwork_forward.1} parent=0 // pred_check
    _
  $region23: #{qnetwork_forward.1} parent=0 // pred_check_branch
    %280 = sbr.rel (0) target = $region25
  $region24: #{qnetwork_forward.1} parent=0 // pred_region
    _
  $region25: #{qnetwork_forward.1} parent=0 // pred_fallthru
    _
  // Predicated region
  $region26: #{qnetwork_forward.1} parent=0 // pred_check
    _
  $region27: #{qnetwork_forward.1} parent=0 // pred_check_branch
    %282 = sbr.rel (0) target = $region29
  $region28: #{qnetwork_forward.1} parent=0 // pred_region
    _
  $region29: #{qnetwork_forward.1} parent=0 // pred_fallthru
    _

</llo_original>
